<compile_context>
chip_gen: v5e
topology: v5e:2x2
jax: 0.10.0
libtpu: 0.0.40
codegen_flags: <defaults>
</compile_context>

<pallas_src>
import jax
import jax.numpy as jnp
from jax.experimental import pallas as pl
from jax.experimental.pallas import tpu as pltpu

MAX_TOKEN_TILE = 512                      # tokens per grid step (upper bound)
OUT_VMEM_BUDGET = 12 * 1024 * 1024        # bytes for 2x double-buffered output blocks
FAST_PATH_TABLE_BYTES = 4 * 1024 * 1024   # table <= this -> keep resident in VMEM
DMA_WINDOW = 16                           # row-gather DMAs kept in flight (HBM path)
UNROLL = 8                                # row-loop unroll factor (both paths)


def _round_up(x, m):
    return ((x + m - 1) // m) * m


def _pick_token_tile(n_tok, row_bytes):
    """Largest tile (multiple of 8, <= MAX_TOKEN_TILE) whose 2x-buffered output
    block fits the VMEM budget.  No forced grid split: on single-TC v5e/v6e one
    big tile amortizes per-step overhead best; larger inputs still tile."""
    tile = min(MAX_TOKEN_TILE, _round_up(n_tok, 8))
    max_by_vmem = max(8, ((OUT_VMEM_BUDGET // (2 * row_bytes)) // 8) * 8)
    return max(8, min(tile, max_by_vmem))


# ---------------------------------------------------------------------------
# Fast path: table resident in VMEM (constant block index), in-kernel gather.
# ---------------------------------------------------------------------------
def _vmem_gather_kernel(nt_ref, ids_ref, table_ref, out_ref):
    # nt_ref:    (1,)    int32 SMEM (unused here; kept for a uniform signature)
    # ids_ref:   (n_pad,) int32 SMEM (scalar-prefetched flattened token ids)
    # table_ref: (V, D)  VMEM (constant block index -> fetched once, resident)
    # out_ref:   (tile, D) VMEM output block for this grid step
    del nt_ref
    tile = out_ref.shape[0]
    base = pl.program_id(0) * tile

    @pl.loop(0, tile // UNROLL)
    def _(c):
        for u in range(UNROLL):               # static unroll: packs loads/stores
            t = c * UNROLL + u
            tok = ids_ref[base + t]
            out_ref[pl.ds(t, 1), :] = table_ref[pl.ds(tok, 1), :]


# ---------------------------------------------------------------------------
# HBM path: manual DMA row gather, per-slot semaphores, tail-guarded.
# ---------------------------------------------------------------------------
def _hbm_gather_kernel(nt_ref, ids_ref, table_ref, out_ref, sems):
    # nt_ref:    (1,)    int32 SMEM (true token count, for tail skipping)
    # ids_ref:   (n_pad,) int32 SMEM (scalar-prefetched flattened token ids)
    # table_ref: (V, D)  HBM ref (memory_space=pl.ANY, no auto-DMA)
    # out_ref:   (tile, D) VMEM output block for this grid step
    # sems:      (DMA_WINDOW,) DMA semaphores, one per in-flight row
    tile = out_ref.shape[0]
    base = pl.program_id(0) * tile
    n_tok = nt_ref[0]

    def start_row(t):
        tok = ids_ref[base + t]
        pltpu.make_async_copy(
            table_ref.at[pl.ds(tok, 1), :],
            out_ref.at[pl.ds(t, 1), :],
            sems.at[t % DMA_WINDOW],
        ).start()

    def wait_row(t):
        pltpu.make_async_copy(
            table_ref.at[pl.ds(0, 1), :],
            out_ref.at[pl.ds(t, 1), :],
            sems.at[t % DMA_WINDOW],
        ).wait()

    # Prime the DMA window (statically unrolled; only real rows issue DMAs).
    for t in range(min(DMA_WINDOW, tile)):
        @pl.when(base + t < n_tok)
        def _(t=t):
            start_row(t)

    # Steady state (8x unrolled): wait for row t on its own semaphore slot,
    # then refill that slot with row t + DMA_WINDOW.  Starts and waits use the
    # same per-row predicate, so counts match exactly per slot.
    @pl.loop(0, tile // UNROLL)
    def _(c):
        for u in range(UNROLL):
            t = c * UNROLL + u

            @pl.when(base + t < n_tok)
            def _(t=t):
                wait_row(t)

            nxt = t + DMA_WINDOW

            @pl.when(jnp.logical_and(nxt < tile, base + nxt < n_tok))
            def _(nxt=nxt):
                start_row(nxt)


# ---------------------------------------------------------------------------
# Wrapper
# ---------------------------------------------------------------------------
def token_embedding(input_ids, table, *, token_tile=None, path=None):
    """Pallas equivalent of TokenEmbedding.forward: (B, L) ids -> (B, L, D)."""
    B, L = input_ids.shape
    V, D = table.shape
    n_tok = B * L
    row_bytes = D * jnp.dtype(table.dtype).itemsize

    if token_tile is None:
        token_tile = _pick_token_tile(n_tok, row_bytes)
    n_tiles = pl.cdiv(n_tok, token_tile)
    n_pad = n_tiles * token_tile

    if path is None:
        path = "vmem" if V * row_bytes <= FAST_PATH_TABLE_BYTES else "hbm"

    # Flatten and clamp ids (avoid OOB reads/DMAs); pad with 0 only when the
    # token count isn't a tile multiple (demo sizes need no pad and no slice).
    ids_flat = jnp.clip(input_ids.reshape(-1).astype(jnp.int32), 0, V - 1)
    if n_pad != n_tok:
        ids_flat = jnp.zeros((n_pad,), jnp.int32).at[:n_tok].set(ids_flat)
    n_tok_arr = jnp.array([n_tok], jnp.int32)

    if path == "vmem":
        kernel = _vmem_gather_kernel
        # Constant block index -> table DMA'd to VMEM once, resident across steps.
        table_spec = pl.BlockSpec((V, D), lambda i, nt, ids: (0, 0))
        scratch = []
    else:
        kernel = _hbm_gather_kernel
        table_spec = pl.BlockSpec(memory_space=pl.ANY)          # stay in HBM
        scratch = [pltpu.SemaphoreType.DMA((DMA_WINDOW,))]

    out_flat = pl.pallas_call(
        kernel,
        out_shape=jax.ShapeDtypeStruct((n_pad, D), table.dtype),
        grid_spec=pltpu.PrefetchScalarGridSpec(
            num_scalar_prefetch=2,              # [n_tok], ids -> SMEM
            grid=(n_tiles,),
            in_specs=[table_spec],
            out_specs=pl.BlockSpec((token_tile, D), lambda i, nt, ids: (i, 0)),
            scratch_shapes=scratch,
        ),
        compiler_params=pltpu.CompilerParams(
            # Independent token tiles; pltpu.CORE_PARALLEL is a benchmark
            # candidate on dual-TC v7x.
            dimension_semantics=("parallel",),
            vmem_limit_bytes=32 * 1024 * 1024,
        ),
    )(n_tok_arr, ids_flat, table)

    out = out_flat if n_pad == n_tok else out_flat[:n_tok]
    return out.reshape(B, L, D)


def init_token_embedding_table(key, vocab_size, embedding_dim, padding_idx=0):
    """Synthetic init mimicking nn.Embedding: N(0,1) rows, padding row zeroed."""
    table = jax.random.normal(key, (vocab_size, embedding_dim), dtype=jnp.float32)
    table = table.at[padding_idx].set(0.0)
    return table


if __name__ == "__main__":
    VOCAB_SIZE = 64
    EMBEDDING_DIM = 32
    PADDING_IDX = 0
    B, L = 2, 8

    key = jax.random.PRNGKey(0)
    k_table, k_ids = jax.random.split(key)

    table = init_token_embedding_table(k_table, VOCAB_SIZE, EMBEDDING_DIM, PADDING_IDX)
    input_ids = jax.random.randint(k_ids, (B, L), 0, VOCAB_SIZE, dtype=jnp.int32)
    # force a couple of padding tokens to exercise padding_idx semantics
    input_ids = input_ids.at[0, 0].set(PADDING_IDX)
    input_ids = input_ids.at[1, -1].set(PADDING_IDX)

    ref = jnp.take(table, input_ids, axis=0)

    # Fast path (table resident in VMEM) — the path real demo sizes hit.
    out_vmem = jax.block_until_ready(token_embedding(input_ids, table, path="vmem"))
    assert out_vmem.shape == (B, L, EMBEDDING_DIM), out_vmem.shape
    assert jnp.array_equal(out_vmem, ref), "mismatch vs reference gather (vmem path)"

    # HBM DMA-gather path (forced, to validate the large-vocab code path).
    out_hbm = jax.block_until_ready(token_embedding(input_ids, table, path="hbm"))
    assert jnp.array_equal(out_hbm, ref), "mismatch vs reference gather (hbm path)"

    # Ragged token count (exercises tail-row skipping in the HBM path).
    ids_ragged = jax.random.randint(k_ids, (3, 7), 0, VOCAB_SIZE, dtype=jnp.int32)
    ref_ragged = jnp.take(table, ids_ragged, axis=0)
    out_ragged = jax.block_until_ready(token_embedding(ids_ragged, table, path="hbm"))
    assert jnp.array_equal(out_ragged, ref_ragged), "mismatch on ragged tail (hbm path)"

    print("KERNEL_OK")
</pallas_src>

<mosaic_0001>
module attributes {stable_mosaic.version = 11 : i64} {
  func.func @_vmem_gather_kernel(%arg0: i32, %arg1: memref<1xi32, #tpu.memory_space<smem>>, %arg2: memref<16xi32, #tpu.memory_space<smem>>, %arg3: memref<64x32xf32, #tpu.memory_space<vmem>>, %arg4: memref<16x32xf32, #tpu.memory_space<vmem>>) attributes {dimension_semantics = [#tpu.dimension_semantics<parallel>], iteration_bounds = array<i64: 1>, scalar_prefetch = 2 : i64, scratch_operands = 0 : i64, tpu.core_type = #tpu.core_type<tc>, window_params = [{pipeline_mode = #tpu.pipeline_mode<synchronous>, transform_indices = @transform_0, window_bounds = array<i64: 64, 32>}, {transform_indices = @transform_1, window_bounds = array<i64: 16, 32>}]} {
    %c16_i32 = arith.constant 16 : i32
    %0 = arith.muli %arg0, %c16_i32 : i32
    %c0_i32 = arith.constant 0 : i32
    %c2_i32 = arith.constant 2 : i32
    %1 = arith.addi %c0_i32, %c2_i32 : i32
    %c1_i32 = arith.constant 1 : i32
    scf.for %arg5 = %c0_i32 to %1 step %c1_i32  : i32 {
      %c1_i32_1 = arith.constant 1 : i32
      %2 = arith.muli %arg5, %c1_i32_1 : i32
      %c0_i32_2 = arith.constant 0 : i32
      %3 = arith.addi %c0_i32_2, %2 : i32
      %c8_i32 = arith.constant 8 : i32
      %4 = arith.muli %3, %c8_i32 : i32
      %c0_i32_3 = arith.constant 0 : i32
      %5 = arith.addi %4, %c0_i32_3 : i32
      %6 = arith.addi %0, %5 : i32
      %7 = arith.index_cast %6 : i32 to index
      %8 = memref.load %arg2[%7] : memref<16xi32, #tpu.memory_space<smem>>
      %9 = arith.index_cast %8 : i32 to index
      %c0 = arith.constant 0 : index
      %10 = vector.load %arg3[%9, %c0] : memref<64x32xf32, #tpu.memory_space<vmem>>, vector<1x32xf32>
      %11 = arith.index_cast %5 : i32 to index
      %c0_4 = arith.constant 0 : index
      %12 = vector.load %arg4[%11, %c0_4] : memref<16x32xf32, #tpu.memory_space<vmem>>, vector<1x32xf32>
      tpu.vector_store %arg4[%11, %c0_4], %10 {strides = array<i32>} : memref<16x32xf32, #tpu.memory_space<vmem>>, vector<1x32xf32>,
      %c8_i32_5 = arith.constant 8 : i32
      %13 = arith.muli %3, %c8_i32_5 : i32
      %c1_i32_6 = arith.constant 1 : i32
      %14 = arith.addi %13, %c1_i32_6 : i32
      %15 = arith.addi %0, %14 : i32
      %16 = arith.index_cast %15 : i32 to index
      %17 = memref.load %arg2[%16] : memref<16xi32, #tpu.memory_space<smem>>
      %18 = arith.index_cast %17 : i32 to index
      %c0_7 = arith.constant 0 : index
      %19 = vector.load %arg3[%18, %c0_7] : memref<64x32xf32, #tpu.memory_space<vmem>>, vector<1x32xf32>
      %20 = arith.index_cast %14 : i32 to index
      %c0_8 = arith.constant 0 : index
      %21 = vector.load %arg4[%20, %c0_8] : memref<16x32xf32, #tpu.memory_space<vmem>>, vector<1x32xf32>
      tpu.vector_store %arg4[%20, %c0_8], %19 {strides = array<i32>} : memref<16x32xf32, #tpu.memory_space<vmem>>, vector<1x32xf32>,
      %c8_i32_9 = arith.constant 8 : i32
      %22 = arith.muli %3, %c8_i32_9 : i32
      %c2_i32_10 = arith.constant 2 : i32
      %23 = arith.addi %22, %c2_i32_10 : i32
      %24 = arith.addi %0, %23 : i32
      %25 = arith.index_cast %24 : i32 to index
      %26 = memref.load %arg2[%25] : memref<16xi32, #tpu.memory_space<smem>>
      %27 = arith.index_cast %26 : i32 to index
      %c0_11 = arith.constant 0 : index
      %28 = vector.load %arg3[%27, %c0_11] : memref<64x32xf32, #tpu.memory_space<vmem>>, vector<1x32xf32>
      %29 = arith.index_cast %23 : i32 to index
      %c0_12 = arith.constant 0 : index
      %30 = vector.load %arg4[%29, %c0_12] : memref<16x32xf32, #tpu.memory_space<vmem>>, vector<1x32xf32>
      tpu.vector_store %arg4[%29, %c0_12], %28 {strides = array<i32>} : memref<16x32xf32, #tpu.memory_space<vmem>>, vector<1x32xf32>,
      %c8_i32_13 = arith.constant 8 : i32
      %31 = arith.muli %3, %c8_i32_13 : i32
      %c3_i32 = arith.constant 3 : i32
      %32 = arith.addi %31, %c3_i32 : i32
      %33 = arith.addi %0, %32 : i32
      %34 = arith.index_cast %33 : i32 to index
      %35 = memref.load %arg2[%34] : memref<16xi32, #tpu.memory_space<smem>>
      %36 = arith.index_cast %35 : i32 to index
      %c0_14 = arith.constant 0 : index
      %37 = vector.load %arg3[%36, %c0_14] : memref<64x32xf32, #tpu.memory_space<vmem>>, vector<1x32xf32>
      %38 = arith.index_cast %32 : i32 to index
      %c0_15 = arith.constant 0 : index
      %39 = vector.load %arg4[%38, %c0_15] : memref<16x32xf32, #tpu.memory_space<vmem>>, vector<1x32xf32>
      tpu.vector_store %arg4[%38, %c0_15], %37 {strides = array<i32>} : memref<16x32xf32, #tpu.memory_space<vmem>>, vector<1x32xf32>,
      %c8_i32_16 = arith.constant 8 : i32
      %40 = arith.muli %3, %c8_i32_16 : i32
      %c4_i32 = arith.constant 4 : i32
      %41 = arith.addi %40, %c4_i32 : i32
      %42 = arith.addi %0, %41 : i32
      %43 = arith.index_cast %42 : i32 to index
      %44 = memref.load %arg2[%43] : memref<16xi32, #tpu.memory_space<smem>>
      %45 = arith.index_cast %44 : i32 to index
      %c0_17 = arith.constant 0 : index
      %46 = vector.load %arg3[%45, %c0_17] : memref<64x32xf32, #tpu.memory_space<vmem>>, vector<1x32xf32>
      %47 = arith.index_cast %41 : i32 to index
      %c0_18 = arith.constant 0 : index
      %48 = vector.load %arg4[%47, %c0_18] : memref<16x32xf32, #tpu.memory_space<vmem>>, vector<1x32xf32>
      tpu.vector_store %arg4[%47, %c0_18], %46 {strides = array<i32>} : memref<16x32xf32, #tpu.memory_space<vmem>>, vector<1x32xf32>,
      %c8_i32_19 = arith.constant 8 : i32
      %49 = arith.muli %3, %c8_i32_19 : i32
      %c5_i32 = arith.constant 5 : i32
      %50 = arith.addi %49, %c5_i32 : i32
      %51 = arith.addi %0, %50 : i32
      %52 = arith.index_cast %51 : i32 to index
      %53 = memref.load %arg2[%52] : memref<16xi32, #tpu.memory_space<smem>>
      %54 = arith.index_cast %53 : i32 to index
      %c0_20 = arith.constant 0 : index
      %55 = vector.load %arg3[%54, %c0_20] : memref<64x32xf32, #tpu.memory_space<vmem>>, vector<1x32xf32>
      %56 = arith.index_cast %50 : i32 to index
      %c0_21 = arith.constant 0 : index
      %57 = vector.load %arg4[%56, %c0_21] : memref<16x32xf32, #tpu.memory_space<vmem>>, vector<1x32xf32>
      tpu.vector_store %arg4[%56, %c0_21], %55 {strides = array<i32>} : memref<16x32xf32, #tpu.memory_space<vmem>>, vector<1x32xf32>,
      %c8_i32_22 = arith.constant 8 : i32
      %58 = arith.muli %3, %c8_i32_22 : i32
      %c6_i32 = arith.constant 6 : i32
      %59 = arith.addi %58, %c6_i32 : i32
      %60 = arith.addi %0, %59 : i32
      %61 = arith.index_cast %60 : i32 to index
      %62 = memref.load %arg2[%61] : memref<16xi32, #tpu.memory_space<smem>>
      %63 = arith.index_cast %62 : i32 to index
      %c0_23 = arith.constant 0 : index
      %64 = vector.load %arg3[%63, %c0_23] : memref<64x32xf32, #tpu.memory_space<vmem>>, vector<1x32xf32>
      %65 = arith.index_cast %59 : i32 to index
      %c0_24 = arith.constant 0 : index
      %66 = vector.load %arg4[%65, %c0_24] : memref<16x32xf32, #tpu.memory_space<vmem>>, vector<1x32xf32>
      tpu.vector_store %arg4[%65, %c0_24], %64 {strides = array<i32>} : memref<16x32xf32, #tpu.memory_space<vmem>>, vector<1x32xf32>,
      %c8_i32_25 = arith.constant 8 : i32
      %67 = arith.muli %3, %c8_i32_25 : i32
      %c7_i32 = arith.constant 7 : i32
      %68 = arith.addi %67, %c7_i32 : i32
      %69 = arith.addi %0, %68 : i32
      %70 = arith.index_cast %69 : i32 to index
      %71 = memref.load %arg2[%70] : memref<16xi32, #tpu.memory_space<smem>>
      %72 = arith.index_cast %71 : i32 to index
      %c0_26 = arith.constant 0 : index
      %73 = vector.load %arg3[%72, %c0_26] : memref<64x32xf32, #tpu.memory_space<vmem>>, vector<1x32xf32>
      %74 = arith.index_cast %68 : i32 to index
      %c0_27 = arith.constant 0 : index
      %75 = vector.load %arg4[%74, %c0_27] : memref<16x32xf32, #tpu.memory_space<vmem>>, vector<1x32xf32>
      tpu.vector_store %arg4[%74, %c0_27], %73 {strides = array<i32>} : memref<16x32xf32, #tpu.memory_space<vmem>>, vector<1x32xf32>,
    }
    %c2_i32_0 = arith.constant 2 : i32
    return
  }
  func.func @transform_0(%arg0: i32, %arg1: memref<1xi32, #tpu.memory_space<smem>>, %arg2: memref<16xi32, #tpu.memory_space<smem>>) -> (i32, i32) {
    %c0_i32 = arith.constant 0 : i32
    %c0_i32_0 = arith.constant 0 : i32
    %c0_i32_1 = arith.constant 0 : i32
    return %c0_i32, %c0_i32_0 : i32, i32
  }
  func.func @transform_1(%arg0: i32, %arg1: memref<1xi32, #tpu.memory_space<smem>>, %arg2: memref<16xi32, #tpu.memory_space<smem>>) -> (i32, i32) {
    %c0_i32 = arith.constant 0 : i32
    %c0_i32_0 = arith.constant 0 : i32
    return %arg0, %c0_i32 : i32, i32
  }
}

</mosaic_0001>

<llo_original>
// kernel: tpu_custom_call.1
$region0: #{tpu_custom_call.1}
  #allocation0 [shape = 'u32[]', space=smem, size = 0x4, offset = 0x4, fixed_abs, tag = 'smem constant byte address 0x4 - core index']
  #allocation1 [shape = 'u32[72,128]{1,0:T(1,128)}', space=vmem, size = 0x9000, scoped, tag = 'internal scratch']
  #allocation2 [shape = 's32[1]{0}', space=sflag, size = 0x4, scoped, tag = 'scoped memory for tpu_custom_call.1']
  #allocation3 [shape = 's32[1]{0:T(128)S(6)}', space=smem, size = 0x200, scoped, tag = 'prefetched SMEM operand 0']
  #allocation4 [shape = 'u8[512]{0}', space=smem, size = 0x200, scoped, tag = 'prefetched SMEM operand 1']
  %s0 = inlined_call_operand.<no memory space> [shape: s32[1], index: 0, kind: input, shape index: {}]
  %s1 = inlined_call_operand.vmem [shape: s32[16], index: 1, kind: input, shape index: {}]
  %s2 = inlined_call_operand.vmem [shape: f32[64,32], index: 2, kind: input, shape index: {}]
  %s3 = inlined_call_operand.hbm [shape: f32[16,32], index: 3, kind: output, shape index: {}]
  %s4 = sld [smem:[#allocation0]]
  $region21: #{tpu_custom_call.1} parent=0
    _
  %s6 = ssub.s32 1, %s4
  %s7 = scalar_select 0, %s6, %s4
  %8 = sst [smem:[#allocation3]] %s0
  %s10 = sshll.u32 %s1, 4
  %s11 = int_to_ptr.vmem [resolvable:$true] %s10
  %13 = dma.vmem_to_smem %s11, 16, [#allocation4], [#allocation2]
  %15 = dma.done [#allocation2], 16
  %16 = sfence
  $region1: #{tpu_custom_call.1} parent=0
    #allocation5 [shape = 'u8[8192]{0}', space=vmem, size = 0x2000, scoped, tag = 'output window, operand 0, single buffered']
    #allocation6 [shape = 's32[1]{0}', space=sflag, size = 0x4, scoped, tag = 'scoped memory for tpu_custom_call.1']
    %17 = vsyncpa [#allocation6], 0
    // Predicated region
    $region2: #{tpu_custom_call.1} parent=1 // pred_check
      _
    $region3: #{tpu_custom_call.1} parent=1 // pred_check_branch
      %19 = sbr.rel (0) target = $region5
    $region4: #{tpu_custom_call.1} parent=1 // pred_region
      _
    $region5: #{tpu_custom_call.1} parent=1 // pred_fallthru
      _
    %s20 = smul.u32 0, 16
    loop: start=0, step=1, limit=2
    $region6: #{tpu_custom_call.1} parent=1 // loop_pre_header
      _
    $region7: #{tpu_custom_call.1} parent=1 // loop_header
      %s22 = sphi 0, %s26
      %p23 = scmp.ge.s32.totalorder %s22, 2
    $region8: #{tpu_custom_call.1} parent=1 // loop_header_branch
      %25 = sbr.rel (%p23) target = $region12
    $region9: #{tpu_custom_call.1} parent=1 // loop_body
      %s27 = smul.u32 %s22, 8
      %s28 = sadd.s32 %s20, %s27
      %s29 = sld [smem:[#allocation4 + %s28]]
      %s30 = scalar_lea.vmem %s2, %s29
      %v31 = vld [vmem:[%s30] sm:$0x1]
      %s32 = scalar_lea.vmem [#allocation5], %s27
      %vm33 = vcmask 253952
      %34 = vst.msk [vmem:[%s32] sm:$0x1] %vm33, %v31
      %s35 = sadd.s32 %s27, 1
      %s36 = sadd.s32 %s20, %s35
      %s37 = sld [smem:[#allocation4 + %s36]]
      %s38 = scalar_lea.vmem %s2, %s37
      %v39 = vld [vmem:[%s38] sm:$0x1]
      %s40 = scalar_lea.vmem [#allocation5], %s35
      %41 = vst.msk [vmem:[%s40] sm:$0x1] %vm33, %v39
      %s42 = sadd.s32 %s27, 2
      %s43 = sadd.s32 %s20, %s42
      %s44 = sld [smem:[#allocation4 + %s43]]
      %s45 = scalar_lea.vmem %s2, %s44
      %v46 = vld [vmem:[%s45] sm:$0x1]
      %s47 = scalar_lea.vmem [#allocation5], %s42
      %48 = vst.msk [vmem:[%s47] sm:$0x1] %vm33, %v46
      %s49 = sadd.s32 %s27, 3
      %s50 = sadd.s32 %s20, %s49
      %s51 = sld [smem:[#allocation4 + %s50]]
      %s52 = scalar_lea.vmem %s2, %s51
      %v53 = vld [vmem:[%s52] sm:$0x1]
      %s54 = scalar_lea.vmem [#allocation5], %s49
      %55 = vst.msk [vmem:[%s54] sm:$0x1] %vm33, %v53
      %s56 = sadd.s32 %s27, 4
      %s57 = sadd.s32 %s20, %s56
      %s58 = sld [smem:[#allocation4 + %s57]]
      %s59 = scalar_lea.vmem %s2, %s58
      %v60 = vld [vmem:[%s59] sm:$0x1]
      %s61 = scalar_lea.vmem [#allocation5], %s56
      %62 = vst.msk [vmem:[%s61] sm:$0x1] %vm33, %v60
      %s63 = sadd.s32 %s27, 5
      %s64 = sadd.s32 %s20, %s63
      %s65 = sld [smem:[#allocation4 + %s64]]
      %s66 = scalar_lea.vmem %s2, %s65
      %v67 = vld [vmem:[%s66] sm:$0x1]
      %s68 = scalar_lea.vmem [#allocation5], %s63
      %69 = vst.msk [vmem:[%s68] sm:$0x1] %vm33, %v67
      %s70 = sadd.s32 %s27, 6
      %s71 = sadd.s32 %s20, %s70
      %s72 = sld [smem:[#allocation4 + %s71]]
      %s73 = scalar_lea.vmem %s2, %s72
      %v74 = vld [vmem:[%s73] sm:$0x1]
      %s75 = scalar_lea.vmem [#allocation5], %s70
      %76 = vst.msk [vmem:[%s75] sm:$0x1] %vm33, %v74
      %s77 = sadd.s32 %s27, 7
      %s78 = sadd.s32 %s20, %s77
      %s79 = sld [smem:[#allocation4 + %s78]]
      %s80 = scalar_lea.vmem %s2, %s79
      %v81 = vld [vmem:[%s80] sm:$0x1]
      %s82 = scalar_lea.vmem [#allocation5], %s77
      %83 = vst.msk [vmem:[%s82] sm:$0x1] %vm33, %v81
    $region10: #{tpu_custom_call.1} parent=1 // loop_footer
      %s26 = sadd.s32 1, %s22
    $region11: #{tpu_custom_call.1} parent=1 // loop_footer_branch
      %21 = sbr.rel target = $region7
    $region12: #{tpu_custom_call.1} parent=1 // loop_exit
      _
    // Predicated region
    $region13: #{tpu_custom_call.1} parent=1 // pred_check
      _
    $region14: #{tpu_custom_call.1} parent=1 // pred_check_branch
      %85 = sbr.rel (0) target = $region16
    $region15: #{tpu_custom_call.1} parent=1 // pred_region
      %87 = vsyncadd [#allocation6], 0
      %s88 = sshll.u32 [#allocation5], 4
      %s89 = int_to_ptr.vmem [resolvable:$true] %s88
      %s90 = sshll.u32 %s3, 4
      %s91 = int_to_ptr.hbm [resolvable:$true] %s90
      %96 = dma.vmem_to_hbm [thread:$0]  %s89, 256, %s91, [#allocation6], 128, 128, 8
    $region16: #{tpu_custom_call.1} parent=1 // pred_fallthru
      _
    // Predicated region
    $region17: #{tpu_custom_call.1} parent=1 // pred_check
      _
    $region18: #{tpu_custom_call.1} parent=1 // pred_check_branch
      %98 = sbr.rel (0) target = $region20
    $region19: #{tpu_custom_call.1} parent=1 // pred_region
      %100 = dma.done [#allocation6], 256
    $region20: #{tpu_custom_call.1} parent=1 // pred_fallthru
      _
    %101 = vsyncpa [#allocation6], 1

</llo_original>
